<compile_context>
chip_gen: v7x
topology: tpu7x:2x2x1
jax: 0.10.0
libtpu: 0.0.40
codegen_flags: <defaults>
</compile_context>

<pallas_src>
import jax
import jax.numpy as jnp
from jax.experimental import pallas as pl
from jax.experimental.pallas import tpu as pltpu


def _round_up(x, m):
    return ((x + m - 1) // m) * m


def _pad2(x, rows, cols):
    return jnp.pad(x, ((0, rows - x.shape[0]), (0, cols - x.shape[1])))


def _policy_fwd_kernel(obs_ref, negmu_ref, inv_ref,
                       w1_ref, b1_ref, w2_ref, b2_ref, w3_ref, b3_ref,
                       out_ref):
    """One batch tile of: normalize -> Linear -> tanh -> Linear -> tanh -> Linear.

    Elementwise math in f32; matmul operands cast to bf16 with f32 MXU
    accumulation.
    """
    x = obs_ref[...].astype(jnp.float32)
    # Fused observation-filter affine: (obs - mu) / (std + 1e-8).
    x = x * inv_ref[...] + negmu_ref[...]

    h = jnp.dot(x.astype(jnp.bfloat16), w1_ref[...],
                preferred_element_type=jnp.float32) + b1_ref[...]
    h = jnp.tanh(h)

    h = jnp.dot(h.astype(jnp.bfloat16), w2_ref[...],
                preferred_element_type=jnp.float32) + b2_ref[...]
    h = jnp.tanh(h)

    y = jnp.dot(h.astype(jnp.bfloat16), w3_ref[...],
                preferred_element_type=jnp.float32) + b3_ref[...]
    out_ref[...] = y.astype(out_ref.dtype)


def prepare_policy_params(params, mu=None, std=None):
    """One-time parameter prep (hoisted out of the per-step hot path).

    params : (w1 (D,H), b1 (H,), w2 (H,H), b2 (H,), w3 (H,A), b3 (A,))
    mu,std : optional (D,) observation-filter stats.  If given, the kernel
             applies (obs - mu)/(std + 1e-8) before the MLP (the act() path);
             if None, forward() semantics (identity).

    Returns a tuple of device arrays to pass to stable_baseline_policy_forward.
    Weights are zero-padded on the hidden axis to a multiple of 128 lanes and
    stored in bf16; biases stay f32.
    """
    w1, b1, w2, b2, w3, b3 = params
    D, H = w1.shape
    A = w3.shape[1]
    Hp = _round_up(H, 128)

    if mu is None:
        inv = jnp.ones((1, D), jnp.float32)
        negmu = jnp.zeros((1, D), jnp.float32)
    else:
        std_eps = std.reshape(1, D).astype(jnp.float32) + jnp.float32(1e-8)
        inv = 1.0 / std_eps
        negmu = -mu.reshape(1, D).astype(jnp.float32) * inv

    w1_p = _pad2(w1, D, Hp).astype(jnp.bfloat16)
    b1_p = _pad2(b1.reshape(1, H).astype(jnp.float32), 1, Hp)
    w2_p = _pad2(w2, Hp, Hp).astype(jnp.bfloat16)
    b2_p = _pad2(b2.reshape(1, H).astype(jnp.float32), 1, Hp)
    w3_p = _pad2(w3, Hp, A).astype(jnp.bfloat16)
    b3_p = b3.reshape(1, A).astype(jnp.float32)

    return (negmu, inv, w1_p, b1_p, w2_p, b2_p, w3_p, b3_p)


def stable_baseline_policy_forward(obs, prepared, *, block_b=1024):
    """Pallas forward of StableBaselinePolicy.

    obs      : (B, obs_dim), native dtype (f32 / bf16).
    prepared : output of prepare_policy_params().

    Returns (B, action_dim) float32 actions.
    """
    negmu, inv, w1_p, b1_p, w2_p, b2_p, w3_p, b3_p = prepared
    B, D = obs.shape
    Hp = w1_p.shape[1]
    A = w3_p.shape[1]

    # Batch tile: multiple of 8 sublanes, capped so that (a) it stays well
    # under scoped-VMEM with double buffering and (b) there are >= 2 grid
    # steps whenever possible so v7x's 2 TensorCores both get work.
    TB = max(8, min(block_b, _round_up(pl.cdiv(B, 2), 8)))
    grid = (pl.cdiv(B, TB),)

    resident = lambda i: (0, 0)            # weights/stats stay in VMEM

    out = pl.pallas_call(
        _policy_fwd_kernel,
        out_shape=jax.ShapeDtypeStruct((B, A), jnp.float32),
        grid=grid,
        in_specs=[
            pl.BlockSpec((TB, D), lambda i: (i, 0)),    # obs tile (native D)
            pl.BlockSpec((1, D), resident),             # -mu/(std+eps)
            pl.BlockSpec((1, D), resident),             # 1/(std+eps)
            pl.BlockSpec((D, Hp), resident),            # W1 (bf16)
            pl.BlockSpec((1, Hp), resident),            # b1
            pl.BlockSpec((Hp, Hp), resident),           # W2 (bf16)
            pl.BlockSpec((1, Hp), resident),            # b2
            pl.BlockSpec((Hp, A), resident),            # W3 (bf16)
            pl.BlockSpec((1, A), resident),             # b3
        ],
        out_specs=pl.BlockSpec((TB, A), lambda i: (i, 0)),
        compiler_params=pltpu.CompilerParams(
            dimension_semantics=("parallel",)),
    )(obs, negmu, inv, w1_p, b1_p, w2_p, b2_p, w3_p, b3_p)

    return out


def _reference_forward(obs, params, mu=None, std=None):
    """Pure-JAX reference with the same bf16-operand / f32-accum matmuls."""
    w1, b1, w2, b2, w3, b3 = params
    x = obs.astype(jnp.float32)
    if mu is not None:
        x = (x - mu) / (std + 1e-8)

    def mm(a, w):
        return jnp.dot(a.astype(jnp.bfloat16), w.astype(jnp.bfloat16),
                       preferred_element_type=jnp.float32)

    h = jnp.tanh(mm(x, w1) + b1)
    h = jnp.tanh(mm(h, w2) + b2)
    return mm(h, w3) + b3


if __name__ == "__main__":
    key = jax.random.PRNGKey(0)
    ks = jax.random.split(key, 10)

    B, obs_dim, hidden, action_dim = 8, 32, 64, 8

    obs = jax.random.normal(ks[0], (B, obs_dim), dtype=jnp.float32)
    w1 = jax.random.normal(ks[1], (obs_dim, hidden), jnp.float32) * 0.1
    b1 = jax.random.normal(ks[2], (hidden,), jnp.float32) * 0.1
    w2 = jax.random.normal(ks[3], (hidden, hidden), jnp.float32) * 0.1
    b2 = jax.random.normal(ks[4], (hidden,), jnp.float32) * 0.1
    w3 = jax.random.normal(ks[5], (hidden, action_dim), jnp.float32) * 0.1
    b3 = jax.random.normal(ks[6], (action_dim,), jnp.float32) * 0.1
    params = (w1, b1, w2, b2, w3, b3)

    mu = jax.random.normal(ks[7], (obs_dim,), jnp.float32)
    std = jax.random.uniform(ks[8], (obs_dim,), jnp.float32,
                             minval=0.5, maxval=2.0)

    # forward() path (no observation filter)
    prep_fwd = prepare_policy_params(params)
    y_fwd = stable_baseline_policy_forward(obs, prep_fwd)
    jax.block_until_ready(y_fwd)
    ref_fwd = _reference_forward(obs, params)
    assert y_fwd.shape == (B, action_dim)
    assert jnp.allclose(y_fwd, ref_fwd, atol=2e-3, rtol=2e-3), "forward mismatch"

    # act() path (observation-filter normalization fused into the kernel)
    prep_act = prepare_policy_params(params, mu=mu, std=std)
    y_act = stable_baseline_policy_forward(obs, prep_act)
    jax.block_until_ready(y_act)
    ref_act = _reference_forward(obs, params, mu=mu, std=std)
    assert jnp.allclose(y_act, ref_act, atol=2e-3, rtol=2e-3), "act mismatch"

    print("KERNEL_OK")
</pallas_src>

<mosaic_0001>
module attributes {stable_mosaic.version = 11 : i64} {
  func.func @_policy_fwd_kernel(%arg0: i32, %arg1: memref<8x32xf32, #tpu.memory_space<vmem>>, %arg2: memref<1x32xf32, #tpu.memory_space<vmem>>, %arg3: memref<1x32xf32, #tpu.memory_space<vmem>>, %arg4: memref<32x128xbf16, #tpu.memory_space<vmem>>, %arg5: memref<1x128xf32, #tpu.memory_space<vmem>>, %arg6: memref<128x128xbf16, #tpu.memory_space<vmem>>, %arg7: memref<1x128xf32, #tpu.memory_space<vmem>>, %arg8: memref<128x8xbf16, #tpu.memory_space<vmem>>, %arg9: memref<1x8xf32, #tpu.memory_space<vmem>>, %arg10: memref<8x8xf32, #tpu.memory_space<vmem>>) attributes {dimension_semantics = [#tpu.dimension_semantics<parallel>], iteration_bounds = array<i64: 1>, scalar_prefetch = 0 : i64, scratch_operands = 0 : i64, tpu.core_type = #tpu.core_type<tc>, window_params = [{transform_indices = @transform_0, window_bounds = array<i64: 8, 32>}, {pipeline_mode = #tpu.pipeline_mode<synchronous>, transform_indices = @transform_1, window_bounds = array<i64: 1, 32>}, {pipeline_mode = #tpu.pipeline_mode<synchronous>, transform_indices = @transform_2, window_bounds = array<i64: 1, 32>}, {pipeline_mode = #tpu.pipeline_mode<synchronous>, transform_indices = @transform_3, window_bounds = array<i64: 32, 128>}, {pipeline_mode = #tpu.pipeline_mode<synchronous>, transform_indices = @transform_4, window_bounds = array<i64: 1, 128>}, {pipeline_mode = #tpu.pipeline_mode<synchronous>, transform_indices = @transform_5, window_bounds = array<i64: 128, 128>}, {pipeline_mode = #tpu.pipeline_mode<synchronous>, transform_indices = @transform_6, window_bounds = array<i64: 1, 128>}, {pipeline_mode = #tpu.pipeline_mode<synchronous>, transform_indices = @transform_7, window_bounds = array<i64: 128, 8>}, {pipeline_mode = #tpu.pipeline_mode<synchronous>, transform_indices = @transform_8, window_bounds = array<i64: 1, 8>}, {transform_indices = @transform_9, window_bounds = array<i64: 8, 8>}]} {
    %c0 = arith.constant 0 : index
    %c0_0 = arith.constant 0 : index
    %0 = vector.load %arg1[%c0, %c0_0] : memref<8x32xf32, #tpu.memory_space<vmem>>, vector<8x32xf32>
    %c0_1 = arith.constant 0 : index
    %c0_2 = arith.constant 0 : index
    %1 = vector.load %arg3[%c0_1, %c0_2] : memref<1x32xf32, #tpu.memory_space<vmem>>, vector<1x32xf32>
    %2 = vector.broadcast %1 : vector<1x32xf32> to vector<8x32xf32>
    %3 = arith.mulf %0, %2 : vector<8x32xf32>
    %c0_3 = arith.constant 0 : index
    %c0_4 = arith.constant 0 : index
    %4 = vector.load %arg2[%c0_3, %c0_4] : memref<1x32xf32, #tpu.memory_space<vmem>>, vector<1x32xf32>
    %5 = vector.broadcast %4 : vector<1x32xf32> to vector<8x32xf32>
    %6 = arith.addf %3, %5 : vector<8x32xf32>
    %7 = arith.truncf %6 : vector<8x32xf32> to vector<8x32xbf16>
    %c0_5 = arith.constant 0 : index
    %c0_6 = arith.constant 0 : index
    %8 = vector.load %arg4[%c0_5, %c0_6] : memref<32x128xbf16, #tpu.memory_space<vmem>>, vector<32x128xbf16>
    %cst = arith.constant dense<0.000000e+00> : vector<8x128xf32>
    %9 = tpu.matmul %7, %8, %cst {dimension_numbers = #tpu.dot_dimension_numbers<[1], [0], [0], [1], [0, 0, 1, 1], [], []>} : vector<8x32xbf16>, vector<32x128xbf16>, vector<8x128xf32> -> vector<8x128xf32>
    %c0_7 = arith.constant 0 : index
    %c0_8 = arith.constant 0 : index
    %10 = vector.load %arg5[%c0_7, %c0_8] : memref<1x128xf32, #tpu.memory_space<vmem>>, vector<1x128xf32>
    %11 = vector.broadcast %10 : vector<1x128xf32> to vector<8x128xf32>
    %12 = arith.addf %9, %11 : vector<8x128xf32>
    %13 = math.tanh %12 : vector<8x128xf32>
    %14 = arith.truncf %13 : vector<8x128xf32> to vector<8x128xbf16>
    %c0_9 = arith.constant 0 : index
    %c0_10 = arith.constant 0 : index
    %15 = vector.load %arg6[%c0_9, %c0_10] : memref<128x128xbf16, #tpu.memory_space<vmem>>, vector<128x128xbf16>
    %cst_11 = arith.constant dense<0.000000e+00> : vector<8x128xf32>
    %16 = tpu.matmul %14, %15, %cst_11 {dimension_numbers = #tpu.dot_dimension_numbers<[1], [0], [0], [1], [0, 0, 1, 1], [], []>} : vector<8x128xbf16>, vector<128x128xbf16>, vector<8x128xf32> -> vector<8x128xf32>
    %c0_12 = arith.constant 0 : index
    %c0_13 = arith.constant 0 : index
    %17 = vector.load %arg7[%c0_12, %c0_13] : memref<1x128xf32, #tpu.memory_space<vmem>>, vector<1x128xf32>
    %18 = vector.broadcast %17 : vector<1x128xf32> to vector<8x128xf32>
    %19 = arith.addf %16, %18 : vector<8x128xf32>
    %20 = math.tanh %19 : vector<8x128xf32>
    %21 = arith.truncf %20 : vector<8x128xf32> to vector<8x128xbf16>
    %c0_14 = arith.constant 0 : index
    %c0_15 = arith.constant 0 : index
    %22 = vector.load %arg8[%c0_14, %c0_15] : memref<128x8xbf16, #tpu.memory_space<vmem>>, vector<128x8xbf16>
    %cst_16 = arith.constant dense<0.000000e+00> : vector<8x8xf32>
    %23 = tpu.matmul %21, %22, %cst_16 {dimension_numbers = #tpu.dot_dimension_numbers<[1], [0], [0], [1], [0, 0, 1, 1], [], []>} : vector<8x128xbf16>, vector<128x8xbf16>, vector<8x8xf32> -> vector<8x8xf32>
    %c0_17 = arith.constant 0 : index
    %c0_18 = arith.constant 0 : index
    %24 = vector.load %arg9[%c0_17, %c0_18] : memref<1x8xf32, #tpu.memory_space<vmem>>, vector<1x8xf32>
    %25 = vector.broadcast %24 : vector<1x8xf32> to vector<8x8xf32>
    %26 = arith.addf %23, %25 : vector<8x8xf32>
    %c0_19 = arith.constant 0 : index
    %c0_20 = arith.constant 0 : index
    %27 = vector.load %arg10[%c0_19, %c0_20] : memref<8x8xf32, #tpu.memory_space<vmem>>, vector<8x8xf32>
    tpu.vector_store %arg10[%c0_19, %c0_20], %26 {strides = array<i32>} : memref<8x8xf32, #tpu.memory_space<vmem>>, vector<8x8xf32>,
    return
  }
  func.func @transform_0(%arg0: i32) -> (i32, i32) {
    %c0_i32 = arith.constant 0 : i32
    %c0_i32_0 = arith.constant 0 : i32
    return %arg0, %c0_i32 : i32, i32
  }
  func.func @transform_1(%arg0: i32) -> (i32, i32) {
    %c0_i32 = arith.constant 0 : i32
    %c0_i32_0 = arith.constant 0 : i32
    %c0_i32_1 = arith.constant 0 : i32
    return %c0_i32, %c0_i32_0 : i32, i32
  }
  func.func @transform_2(%arg0: i32) -> (i32, i32) {
    %c0_i32 = arith.constant 0 : i32
    %c0_i32_0 = arith.constant 0 : i32
    %c0_i32_1 = arith.constant 0 : i32
    return %c0_i32, %c0_i32_0 : i32, i32
  }
  func.func @transform_3(%arg0: i32) -> (i32, i32) {
    %c0_i32 = arith.constant 0 : i32
    %c0_i32_0 = arith.constant 0 : i32
    %c0_i32_1 = arith.constant 0 : i32
    return %c0_i32, %c0_i32_0 : i32, i32
  }
  func.func @transform_4(%arg0: i32) -> (i32, i32) {
    %c0_i32 = arith.constant 0 : i32
    %c0_i32_0 = arith.constant 0 : i32
    %c0_i32_1 = arith.constant 0 : i32
    return %c0_i32, %c0_i32_0 : i32, i32
  }
  func.func @transform_5(%arg0: i32) -> (i32, i32) {
    %c0_i32 = arith.constant 0 : i32
    %c0_i32_0 = arith.constant 0 : i32
    %c0_i32_1 = arith.constant 0 : i32
    return %c0_i32, %c0_i32_0 : i32, i32
  }
  func.func @transform_6(%arg0: i32) -> (i32, i32) {
    %c0_i32 = arith.constant 0 : i32
    %c0_i32_0 = arith.constant 0 : i32
    %c0_i32_1 = arith.constant 0 : i32
    return %c0_i32, %c0_i32_0 : i32, i32
  }
  func.func @transform_7(%arg0: i32) -> (i32, i32) {
    %c0_i32 = arith.constant 0 : i32
    %c0_i32_0 = arith.constant 0 : i32
    %c0_i32_1 = arith.constant 0 : i32
    return %c0_i32, %c0_i32_0 : i32, i32
  }
  func.func @transform_8(%arg0: i32) -> (i32, i32) {
    %c0_i32 = arith.constant 0 : i32
    %c0_i32_0 = arith.constant 0 : i32
    %c0_i32_1 = arith.constant 0 : i32
    return %c0_i32, %c0_i32_0 : i32, i32
  }
  func.func @transform_9(%arg0: i32) -> (i32, i32) {
    %c0_i32 = arith.constant 0 : i32
    %c0_i32_0 = arith.constant 0 : i32
    return %arg0, %c0_i32 : i32, i32
  }
}

</mosaic_0001>

<llo_original>
// kernel: tpu_custom_call.1
$region0: #{tpu_custom_call.1}
  #allocation0 [shape = 'u32[]', space=smem, size = 0x4, offset = 0x4, fixed_abs, tag = 'smem constant byte address 0x4 - core index']
  #allocation1 [shape = 'u32[144,128]{1,0:T(1,128)}', space=vmem, size = 0x12000, scoped, tag = 'internal scratch']
  %s0 = inlined_call_operand.hbm [shape: f32[8,32], index: 0, kind: input, shape index: {}]
  %s1 = inlined_call_operand.vmem [shape: f32[1,32], index: 1, kind: input, shape index: {}]
  %s2 = inlined_call_operand.vmem [shape: f32[1,32], index: 2, kind: input, shape index: {}]
  %s3 = inlined_call_operand.vmem [shape: bf16[32,128], index: 3, kind: input, shape index: {}]
  %s4 = inlined_call_operand.vmem [shape: f32[1,128], index: 4, kind: input, shape index: {}]
  %s5 = inlined_call_operand.vmem [shape: bf16[128,128], index: 5, kind: input, shape index: {}]
  %s6 = inlined_call_operand.vmem [shape: f32[1,128], index: 6, kind: input, shape index: {}]
  %s7 = inlined_call_operand.vmem [shape: bf16[128,8], index: 7, kind: input, shape index: {}]
  %s8 = inlined_call_operand.vmem [shape: f32[1,8], index: 8, kind: input, shape index: {}]
  %s9 = inlined_call_operand.hbm [shape: f32[8,8], index: 9, kind: output, shape index: {}]
  %s10 = sld [smem:[#allocation0]]
  $region50: #{tpu_custom_call.1} parent=0
    _
  %s12 = ssub.s32 1, %s10
  %s13 = scalar_select 0, %s12, %s10
  $region1: #{tpu_custom_call.1} parent=0
    #allocation2 [shape = 'u8[4096]{0}', space=vmem, size = 0x1000, scoped, tag = 'input window, operand 0, single buffered']
    #allocation3 [shape = 's32[1]{0}', space=sflag, size = 0x4, scoped, tag = 'scoped memory for tpu_custom_call.1']
    #allocation4 [shape = 's32[1]{0}', space=sflag, size = 0x4, scoped, tag = 'scoped memory for tpu_custom_call.1']
    #allocation5 [shape = 'u8[4096]{0}', space=vmem, size = 0x1000, scoped, tag = 'output window, operand 0, single buffered']
    %14 = vsyncpa [#allocation3], 0
    %15 = vsyncpa [#allocation4], 0
    // Predicated region
    $region2: #{tpu_custom_call.1} parent=1 // pred_check
      _
    $region3: #{tpu_custom_call.1} parent=1 // pred_check_branch
      %17 = sbr.rel (0) target = $region5
    $region4: #{tpu_custom_call.1} parent=1 // pred_region
      %s19 = ssub.s32 128, 128
      %20 = vsyncadd [#allocation3], %s19
      %s22 = sshll.u32 [#allocation2], 4
      %s23 = int_to_ptr.vmem [resolvable:$true] %s22
      %25 = dma.hbm_to_vmem [thread:$0]  %s0, 128, %s23, [#allocation3]
    $region5: #{tpu_custom_call.1} parent=1 // pred_fallthru
      _
    // Predicated region
    $region6: #{tpu_custom_call.1} parent=1 // pred_check
      _
    $region7: #{tpu_custom_call.1} parent=1 // pred_check_branch
      %27 = sbr.rel (0) target = $region9
    $region8: #{tpu_custom_call.1} parent=1 // pred_region
      _
    $region9: #{tpu_custom_call.1} parent=1 // pred_fallthru
      _
    // Predicated region
    $region10: #{tpu_custom_call.1} parent=1 // pred_check
      _
    $region11: #{tpu_custom_call.1} parent=1 // pred_check_branch
      %29 = sbr.rel (0) target = $region13
    $region12: #{tpu_custom_call.1} parent=1 // pred_region
      _
    $region13: #{tpu_custom_call.1} parent=1 // pred_fallthru
      _
    // Predicated region
    $region14: #{tpu_custom_call.1} parent=1 // pred_check
      _
    $region15: #{tpu_custom_call.1} parent=1 // pred_check_branch
      %31 = sbr.rel (0) target = $region17
    $region16: #{tpu_custom_call.1} parent=1 // pred_region
      _
    $region17: #{tpu_custom_call.1} parent=1 // pred_fallthru
      _
    // Predicated region
    $region18: #{tpu_custom_call.1} parent=1 // pred_check
      _
    $region19: #{tpu_custom_call.1} parent=1 // pred_check_branch
      %33 = sbr.rel (0) target = $region21
    $region20: #{tpu_custom_call.1} parent=1 // pred_region
      _
    $region21: #{tpu_custom_call.1} parent=1 // pred_fallthru
      _
    // Predicated region
    $region22: #{tpu_custom_call.1} parent=1 // pred_check
      _
    $region23: #{tpu_custom_call.1} parent=1 // pred_check_branch
      %35 = sbr.rel (0) target = $region25
    $region24: #{tpu_custom_call.1} parent=1 // pred_region
      _
    $region25: #{tpu_custom_call.1} parent=1 // pred_fallthru
      _
    // Predicated region
    $region26: #{tpu_custom_call.1} parent=1 // pred_check
      _
    $region27: #{tpu_custom_call.1} parent=1 // pred_check_branch
      %37 = sbr.rel (0) target = $region29
    $region28: #{tpu_custom_call.1} parent=1 // pred_region
      _
    $region29: #{tpu_custom_call.1} parent=1 // pred_fallthru
      _
    // Predicated region
    $region30: #{tpu_custom_call.1} parent=1 // pred_check
      _
    $region31: #{tpu_custom_call.1} parent=1 // pred_check_branch
      %39 = sbr.rel (0) target = $region33
    $region32: #{tpu_custom_call.1} parent=1 // pred_region
      _
    $region33: #{tpu_custom_call.1} parent=1 // pred_fallthru
      _
    // Predicated region
    $region34: #{tpu_custom_call.1} parent=1 // pred_check
      _
    $region35: #{tpu_custom_call.1} parent=1 // pred_check_branch
      %41 = sbr.rel (0) target = $region37
    $region36: #{tpu_custom_call.1} parent=1 // pred_region
      _
    $region37: #{tpu_custom_call.1} parent=1 // pred_fallthru
      _
    // Predicated region
    $region38: #{tpu_custom_call.1} parent=1 // pred_check
      _
    $region39: #{tpu_custom_call.1} parent=1 // pred_check_branch
      %43 = sbr.rel (0) target = $region41
    $region40: #{tpu_custom_call.1} parent=1 // pred_region
      %44 = dma.done [#allocation3], 128
    $region41: #{tpu_custom_call.1} parent=1 // pred_fallthru
      _
    %v46 = vld [vmem:[#allocation2] sm:$0xff]
    %v47 = vld [vmem:[%s2] sm:$0x1]
    %v49 = vlaneseq
    %v50 = vshrl.u32 %v49, 7
    %v51 = vsub.s32 0, %v50
    %v52 = vrot.slane %v47, %v51
    %v54 = vmul.f32 %v46, %v52
    %v55 = vld [vmem:[%s1] sm:$0x1]
    %v57 = vlaneseq
    %v58 = vshrl.u32 %v57, 7
    %v59 = vsub.s32 0, %v58
    %v60 = vrot.slane %v55, %v59
    %v62 = vadd.f32 %v54, %v60
    %v63 = vpack.c.bf16 %v62, %v62
    %v64 = vld [vmem:[%s3] sm:$0xf]
    %v65 = vld [vmem:[%s3 + $0x4] sm:$0xf]
    %v66 = vld [vmem:[%s3 + $0x8] sm:$0xf]
    %v67 = vld [vmem:[%s3 + $0xc] sm:$0xf]
    %v68 = vld [vmem:[%s4] sm:$0x1]
    %v70 = vlaneseq
    %v71 = vshrl.u32 %v70, 7
    %v72 = vsub.s32 0, %v71
    %v73 = vrot.slane %v68, %v72
    %v79 = vunpack.c.l.b16 %v64
    %v80 = vunpack.c.l.b16 %v65
    %v81 = vunpack.c.l.b16 %v66
    %v82 = vunpack.c.l.b16 %v67
    %v83 = vpack.c.b16 %v80, %v79
    %v84 = vpack.c.b16 %v82, %v81
    %vm87 = vcmask 261120
    %v89 = vsel %vm87, %v63, 0
    %91 = vmatprep.subr.bf16.mxu0 0
    %92 = vmatpush1.bf16.msra.mxu0 %v83
    %93 = vmatprep.subr.bf16.mxu0 0
    %94 = vmatpush1.bf16.msra.mxu0 %v84
    %95 = vmatprep.subr.bf16.mxu0 0
    %96 = vmatpush1.bf16.msra.mxu0 0
    %97 = vmatprep.subr.bf16.mxu0 0
    %98 = vmatpush1.bf16.msra.mxu0 0
    %99 = vmatprep.subr.bf16.mxu0 0
    %100 = vmatpush1.bf16.msra.mxu0 0
    %101 = vmatprep.subr.bf16.mxu0 0
    %102 = vmatpush1.bf16.msra.mxu0 0
    %103 = vmatprep.subr.bf16.mxu0 0
    %104 = vmatpush1.bf16.msra.mxu0 0
    %105 = vmatprep.subr.bf16.mxu0 0
    %106 = vmatpush1.bf16.msra.mxu0 0
    %107 = vmatprep.subr.bf16.mxu0 0
    %108 = vmatpush1.bf16.msra.mxu0 0
    %109 = vmatprep.subr.bf16.mxu0 0
    %110 = vmatpush1.bf16.msra.mxu0 0
    %111 = vmatprep.subr.bf16.mxu0 0
    %112 = vmatpush1.bf16.msra.mxu0 0
    %113 = vmatprep.subr.bf16.mxu0 0
    %114 = vmatpush1.bf16.msra.mxu0 0
    %115 = vmatprep.subr.bf16.mxu0 0
    %116 = vmatpush1.bf16.msra.mxu0 0
    %117 = vmatprep.subr.bf16.mxu0 0
    %118 = vmatpush1.bf16.msra.mxu0 0
    %119 = vmatprep.subr.bf16.mxu0 0
    %120 = vmatpush1.bf16.msra.mxu0 0
    %121 = vmatprep.subr.bf16.mxu0 0
    %122 = vmatpush1.bf16.msra.mxu0 0
    %123 = vmatprep.mubr.bf16.mxu0 0
    %124 = vmatmul.mubr.bf16.gmra.mrb[0].mxu0 %v89
    %v125 = vpop.f32.mrb[0].mxu0
    %v126 = vadd.f32 %v73, %v125
    %v127 = vpop.f32.mrb[0].mxu0
    %v128 = vpop.f32.mrb[0].mxu0
    %v129 = vpop.f32.mrb[0].mxu0
    %130 = vdwg.mxu0
    %v131 = vtanh.pop %v126
    %v132 = vpack.c.bf16 %v131, %v131
    %v133 = vld [vmem:[%s5] sm:$0xf]
    %v134 = vld [vmem:[%s5 + $0x4] sm:$0xf]
    %v135 = vld [vmem:[%s5 + $0x8] sm:$0xf]
    %v136 = vld [vmem:[%s5 + $0xc] sm:$0xf]
    %v137 = vld [vmem:[%s5 + $0x10] sm:$0xf]
    %v138 = vld [vmem:[%s5 + $0x14] sm:$0xf]
    %v139 = vld [vmem:[%s5 + $0x18] sm:$0xf]
    %v140 = vld [vmem:[%s5 + $0x1c] sm:$0xf]
    %v141 = vld [vmem:[%s5 + $0x20] sm:$0xf]
    %v142 = vld [vmem:[%s5 + $0x24] sm:$0xf]
    %v143 = vld [vmem:[%s5 + $0x28] sm:$0xf]
    %v144 = vld [vmem:[%s5 + $0x2c] sm:$0xf]
    %v145 = vld [vmem:[%s5 + $0x30] sm:$0xf]
    %v146 = vld [vmem:[%s5 + $0x34] sm:$0xf]
    %v147 = vld [vmem:[%s5 + $0x38] sm:$0xf]
    %v148 = vld [vmem:[%s5 + $0x3c] sm:$0xf]
    %v149 = vld [vmem:[%s6] sm:$0x1]
    %v151 = vlaneseq
    %v152 = vshrl.u32 %v151, 7
    %v153 = vsub.s32 0, %v152
    %v154 = vrot.slane %v149, %v153
    %v172 = vunpack.c.l.b16 %v133
    %v173 = vunpack.c.l.b16 %v134
    %v174 = vunpack.c.l.b16 %v135
    %v175 = vunpack.c.l.b16 %v136
    %v176 = vunpack.c.l.b16 %v137
    %v177 = vunpack.c.l.b16 %v138
    %v178 = vunpack.c.l.b16 %v139
    %v179 = vunpack.c.l.b16 %v140
    %v180 = vunpack.c.l.b16 %v141
    %v181 = vunpack.c.l.b16 %v142
    %v182 = vunpack.c.l.b16 %v143
    %v183 = vunpack.c.l.b16 %v144
    %v184 = vunpack.c.l.b16 %v145
    %v185 = vunpack.c.l.b16 %v146
    %v186 = vunpack.c.l.b16 %v147
    %v187 = vunpack.c.l.b16 %v148
    %v188 = vpack.c.b16 %v173, %v172
    %v189 = vpack.c.b16 %v175, %v174
    %v190 = vpack.c.b16 %v177, %v176
    %v191 = vpack.c.b16 %v179, %v178
    %v192 = vpack.c.b16 %v181, %v180
    %v193 = vpack.c.b16 %v183, %v182
    %v194 = vpack.c.b16 %v185, %v184
    %v195 = vpack.c.b16 %v187, %v186
    %204 = vmatprep.subr.bf16.mxu0 0
    %205 = vmatpush1.bf16.msra.mxu0 %v188
    %206 = vmatprep.subr.bf16.mxu0 0
    %207 = vmatpush1.bf16.msra.mxu0 %v189
    %208 = vmatprep.subr.bf16.mxu0 0
    %209 = vmatpush1.bf16.msra.mxu0 %v190
    %210 = vmatprep.subr.bf16.mxu0 0
    %211 = vmatpush1.bf16.msra.mxu0 %v191
    %212 = vmatprep.subr.bf16.mxu0 0
    %213 = vmatpush1.bf16.msra.mxu0 %v192
    %214 = vmatprep.subr.bf16.mxu0 0
    %215 = vmatpush1.bf16.msra.mxu0 %v193
    %216 = vmatprep.subr.bf16.mxu0 0
    %217 = vmatpush1.bf16.msra.mxu0 %v194
    %218 = vmatprep.subr.bf16.mxu0 0
    %219 = vmatpush1.bf16.msra.mxu0 %v195
    %220 = vmatprep.subr.bf16.mxu0 0
    %221 = vmatpush1.bf16.msra.mxu0 0
    %222 = vmatprep.subr.bf16.mxu0 0
    %223 = vmatpush1.bf16.msra.mxu0 0
    %224 = vmatprep.subr.bf16.mxu0 0
    %225 = vmatpush1.bf16.msra.mxu0 0
    %226 = vmatprep.subr.bf16.mxu0 0
    %227 = vmatpush1.bf16.msra.mxu0 0
    %228 = vmatprep.subr.bf16.mxu0 0
    %229 = vmatpush1.bf16.msra.mxu0 0
    %230 = vmatprep.subr.bf16.mxu0 0
    %231 = vmatpush1.bf16.msra.mxu0 0
    %232 = vmatprep.subr.bf16.mxu0 0
    %233 = vmatpush1.bf16.msra.mxu0 0
    %234 = vmatprep.subr.bf16.mxu0 0
    %235 = vmatpush1.bf16.msra.mxu0 0
    %236 = vmatprep.mubr.bf16.mxu0 0
    %237 = vmatmul.mubr.bf16.gmra.mrb[0].mxu0 %v132
    %v238 = vpop.f32.mrb[0].mxu0
    %v239 = vadd.f32 %v154, %v238
    %v240 = vpop.f32.mrb[0].mxu0
    %v241 = vpop.f32.mrb[0].mxu0
    %v242 = vpop.f32.mrb[0].mxu0
    %243 = vdwg.mxu0
    %v244 = vtanh.pop %v239
    %v245 = vpack.c.bf16 %v244, %v244
    %v246 = vld [vmem:[%s7] sm:$0xf]
    %v247 = vld [vmem:[%s7 + $0x4] sm:$0xf]
    %v248 = vld [vmem:[%s7 + $0x8] sm:$0xf]
    %v249 = vld [vmem:[%s7 + $0xc] sm:$0xf]
    %v250 = vld [vmem:[%s7 + $0x10] sm:$0xf]
    %v251 = vld [vmem:[%s7 + $0x14] sm:$0xf]
    %v252 = vld [vmem:[%s7 + $0x18] sm:$0xf]
    %v253 = vld [vmem:[%s7 + $0x1c] sm:$0xf]
    %v254 = vld [vmem:[%s7 + $0x20] sm:$0xf]
    %v255 = vld [vmem:[%s7 + $0x24] sm:$0xf]
    %v256 = vld [vmem:[%s7 + $0x28] sm:$0xf]
    %v257 = vld [vmem:[%s7 + $0x2c] sm:$0xf]
    %v258 = vld [vmem:[%s7 + $0x30] sm:$0xf]
    %v259 = vld [vmem:[%s7 + $0x34] sm:$0xf]
    %v260 = vld [vmem:[%s7 + $0x38] sm:$0xf]
    %v261 = vld [vmem:[%s7 + $0x3c] sm:$0xf]
    %v262 = vld [vmem:[%s8] sm:$0x1]
    %v264 = vlaneseq
    %v265 = vshrl.u32 %v264, 7
    %v266 = vsub.s32 0, %v265
    %v267 = vrot.slane %v262, %v266
    %v285 = vunpack.c.l.b16 %v246
    %v286 = vunpack.c.l.b16 %v247
    %v287 = vunpack.c.l.b16 %v248
    %v288 = vunpack.c.l.b16 %v249
    %v289 = vunpack.c.l.b16 %v250
    %v290 = vunpack.c.l.b16 %v251
    %v291 = vunpack.c.l.b16 %v252
    %v292 = vunpack.c.l.b16 %v253
    %v293 = vunpack.c.l.b16 %v254
    %v294 = vunpack.c.l.b16 %v255
    %v295 = vunpack.c.l.b16 %v256
    %v296 = vunpack.c.l.b16 %v257
    %v297 = vunpack.c.l.b16 %v258
    %v298 = vunpack.c.l.b16 %v259
    %v299 = vunpack.c.l.b16 %v260
    %v300 = vunpack.c.l.b16 %v261
    %v301 = vpack.c.b16 %v286, %v285
    %v302 = vpack.c.b16 %v288, %v287
    %v303 = vpack.c.b16 %v290, %v289
    %v304 = vpack.c.b16 %v292, %v291
    %v305 = vpack.c.b16 %v294, %v293
    %v306 = vpack.c.b16 %v296, %v295
    %v307 = vpack.c.b16 %v298, %v297
    %v308 = vpack.c.b16 %v300, %v299
    %317 = vmatprep.subr.bf16.mxu0 0
    %318 = vmatpush1.bf16.msra.mxu0 %v301
    %319 = vmatprep.subr.bf16.mxu0 0
    %320 = vmatpush1.bf16.msra.mxu0 %v302
    %321 = vmatprep.subr.bf16.mxu0 0
    %322 = vmatpush1.bf16.msra.mxu0 %v303
    %323 = vmatprep.subr.bf16.mxu0 0
    %324 = vmatpush1.bf16.msra.mxu0 %v304
    %325 = vmatprep.subr.bf16.mxu0 0
    %326 = vmatpush1.bf16.msra.mxu0 %v305
    %327 = vmatprep.subr.bf16.mxu0 0
    %328 = vmatpush1.bf16.msra.mxu0 %v306
    %329 = vmatprep.subr.bf16.mxu0 0
    %330 = vmatpush1.bf16.msra.mxu0 %v307
    %331 = vmatprep.subr.bf16.mxu0 0
    %332 = vmatpush1.bf16.msra.mxu0 %v308
    %333 = vmatprep.subr.bf16.mxu0 0
    %334 = vmatpush1.bf16.msra.mxu0 0
    %335 = vmatprep.subr.bf16.mxu0 0
    %336 = vmatpush1.bf16.msra.mxu0 0
    %337 = vmatprep.subr.bf16.mxu0 0
    %338 = vmatpush1.bf16.msra.mxu0 0
    %339 = vmatprep.subr.bf16.mxu0 0
    %340 = vmatpush1.bf16.msra.mxu0 0
    %341 = vmatprep.subr.bf16.mxu0 0
    %342 = vmatpush1.bf16.msra.mxu0 0
    %343 = vmatprep.subr.bf16.mxu0 0
    %344 = vmatpush1.bf16.msra.mxu0 0
    %345 = vmatprep.subr.bf16.mxu0 0
    %346 = vmatpush1.bf16.msra.mxu0 0
    %347 = vmatprep.subr.bf16.mxu0 0
    %348 = vmatpush1.bf16.msra.mxu0 0
    %349 = vmatprep.mubr.bf16.mxu0 0
    %350 = vmatmul.mubr.bf16.gmra.mrb[0].mxu0 %v245
    %v351 = vpop.f32.mrb[0].mxu0
    %v352 = vadd.f32 %v267, %v351
    %v353 = vpop.f32.mrb[0].mxu0
    %v354 = vpop.f32.mrb[0].mxu0
    %v355 = vpop.f32.mrb[0].mxu0
    %356 = vdwg.mxu0
    %vm357 = vcmask 64512
    %358 = vst.msk [vmem:[#allocation5] sm:$0xff] %vm357, %v352
    // Predicated region
    $region42: #{tpu_custom_call.1} parent=1 // pred_check
      _
    $region43: #{tpu_custom_call.1} parent=1 // pred_check_branch
      %360 = sbr.rel (0) target = $region45
    $region44: #{tpu_custom_call.1} parent=1 // pred_region
      %s362 = ssub.s32 128, 128
      %363 = vsyncadd [#allocation4], %s362
      %s365 = sshll.u32 [#allocation5], 4
      %s366 = int_to_ptr.vmem [resolvable:$true] %s365
      %368 = dma.vmem_to_hbm [thread:$0]  %s366, 128, %s9, [#allocation4]
    $region45: #{tpu_custom_call.1} parent=1 // pred_fallthru
      _
    // Predicated region
    $region46: #{tpu_custom_call.1} parent=1 // pred_check
      _
    $region47: #{tpu_custom_call.1} parent=1 // pred_check_branch
      %370 = sbr.rel (0) target = $region49
    $region48: #{tpu_custom_call.1} parent=1 // pred_region
      %371 = dma.done [#allocation4], 128
    $region49: #{tpu_custom_call.1} parent=1 // pred_fallthru
      _
    %372 = vsyncpa [#allocation3], 1
    %373 = vsyncpa [#allocation4], 1

</llo_original>
